<compile_context>
chip_gen: v7x
topology: tpu7x:2x2x1
jax: 0.10.0
libtpu: 0.0.40
codegen_flags: <defaults>
</compile_context>

<pallas_src>
import functools

import jax
import jax.numpy as jnp
from jax import lax
from jax.experimental import pallas as pl
from jax.experimental.pallas import tpu as pltpu


# ---------------------------------------------------------------------------
# helpers
# ---------------------------------------------------------------------------
def _round_up(x, m):
    return ((x + m - 1) // m) * m


# ---------------------------------------------------------------------------
# Fused layer kernel
#   grid = (node_tiles, edge_tiles)  -- edge axis is the reduction ("arbitrary")
#   inputs : row ids (1,te), col ids (1,te), packed slab (te,SW), w_pad (2*SW,OP),
#            b_pad (1,OP)
#   output : h_pad (tn, OP)
#   scratch: acc_row (tn,SW), acc_col (tn,SW)   (f32 accumulators)
#   slab columns: [x[col] (0:F) | x[row] (F:2F) | edge_label_trans (2F:3F) | 0.. | 1]
#   column SW-1 is all-ones so edge counts come out of the same MXU matmul for free.
# ---------------------------------------------------------------------------
def _fused_layer_kernel(row_ref, col_ref, src_ref, w_ref, b_ref, o_ref,
                        acc_row, acc_col, *, approx_recip):
    tn = o_ref.shape[0]
    k = pl.program_id(1)

    @pl.when(k == 0)
    def _():
        acc_row[...] = jnp.zeros_like(acc_row)
        acc_col[...] = jnp.zeros_like(acc_col)

    n0 = pl.program_id(0) * tn
    # Shift the node-tile offset onto the (1,te) id vectors (cheap) instead of the
    # (tn,te) iota (wide VALU add).  Padded edge ids are -1 and never match.
    rloc = row_ref[...] - n0                          # (1, te) int32
    cloc = col_ref[...] - n0
    te = rloc.shape[1]
    node = lax.broadcasted_iota(jnp.int32, (tn, te), 0)

    src = src_ref[...]                                # (te, SW) packed source slab
    mrow = (node == rloc).astype(src.dtype)           # (tn, te) one-hot dest masks
    mcol = (node == cloc).astype(src.dtype)

    # Masked one-hot aggregation on the MXU (bf16 or f32), f32 accumulation.
    acc_row[...] += jnp.dot(mrow, src, preferred_element_type=jnp.float32)
    acc_col[...] += jnp.dot(mcol, src, preferred_element_type=jnp.float32)

    @pl.when(k == pl.num_programs(1) - 1)
    def _():
        sr = acc_row[...]                             # (tn, SW) sums; counts in last lane
        sc = acc_col[...]
        sw = sr.shape[1]
        deg_r = jnp.maximum(sr[:, sw - 1:sw], 1.0)    # (tn, 1) edge counts (clamped)
        deg_c = jnp.maximum(sc[:, sw - 1:sw], 1.0)
        if approx_recip:
            cat_r = sr * pl.reciprocal(deg_r, approx=True)   # EUP slot (free-ish)
            cat_c = sc * pl.reciprocal(deg_c, approx=True)
        else:
            cat_r = sr / deg_r                        # exact divide keeps f32 parity
            cat_c = sc / deg_c
        cat = jnp.concatenate([cat_r, cat_c], axis=1)        # (tn, 2*SW)
        out = jnp.dot(cat, w_ref[...], preferred_element_type=jnp.float32) + b_ref[...]
        o_ref[...] = jnp.maximum(out, 0.0)            # fused ReLU


# ---------------------------------------------------------------------------
# Layer wrapper (padding / layout plumbing in plain JAX)
# ---------------------------------------------------------------------------
def fused_conv_layer(x, row, col, edge_label, params, *, tn=128, te=2048,
                     agg_dtype=jnp.bfloat16):
    """ConvolutionBase_in_out / ConvolutionDeep_in_out forward (robust_aggr=False,
    norm_embed=False) with the GCN's ReLU fused in."""
    N, F = x.shape
    w = params["weight"]
    b = params["bias"]
    tw = params["trans_weight"]
    O = w.shape[1]
    assert w.shape[0] == 4 * F
    E = row.shape[0]

    SW = _round_up(3 * F + 1, 128)     # packed slab width: [x_col|x_row|elt|pad|1]
    OP = _round_up(O, 128)             # lane-dense output width
    NP = _round_up(N, tn)
    te = min(te, _round_up(E, 128))
    EP = _round_up(E, te)

    # edge-label transform: K = num_labels (tiny) -> plain XLA (for one-hot labels it
    # is just a row gather of trans_weight), no Pallas launch needed.
    elt = jnp.dot(edge_label, tw)                      # (E, F)

    # TODO(synk): for production graph sizes pre-sort edges by destination and use
    # PrefetchScalarGridSpec(num_scalar_prefetch=2) with per-node-tile edge-range
    # offsets in the index_maps (plus in-kernel x[row]/x[col] DMA gathers) so each
    # edge tile streams only to its owning node tile -- the dense one-hot formulation
    # below is O(N*E).
    x32 = x.astype(jnp.float32)
    slab = jnp.zeros((EP, SW), jnp.float32)
    slab = slab.at[:E, 0:F].set(x32[col])              # aggregated by row  -> "out"
    slab = slab.at[:E, F:2 * F].set(x32[row])          # aggregated by col  -> "inn"
    slab = slab.at[:E, 2 * F:3 * F].set(elt)           # by row -> "opinion", by col -> "inn_opinion"
    slab = slab.at[:E, SW - 1].set(1.0)                # edge-count column
    slab = slab.astype(agg_dtype)

    # padded edge indices; -1 never matches a node id
    rid = jnp.pad(row.astype(jnp.int32), (0, EP - E), constant_values=-1).reshape(1, EP)
    cid = jnp.pad(col.astype(jnp.int32), (0, EP - E), constant_values=-1).reshape(1, EP)

    # weight re-layout onto cat = [acc_row segments | acc_col segments]:
    #   acc_row: x_col -> "out" (w[0:F]),     elt -> "opinion"     (w[F:2F])
    #   acc_col: x_row -> "inn" (w[2F:3F]),   elt -> "inn_opinion" (w[3F:4F])
    w_pad = jnp.zeros((2 * SW, OP), jnp.float32)
    w_pad = w_pad.at[0:F, :O].set(w[0:F])
    w_pad = w_pad.at[2 * F:3 * F, :O].set(w[F:2 * F])
    w_pad = w_pad.at[SW + F:SW + 2 * F, :O].set(w[2 * F:3 * F])
    w_pad = w_pad.at[SW + 2 * F:SW + 3 * F, :O].set(w[3 * F:4 * F])
    b_pad = jnp.pad(b.astype(jnp.float32), (0, OP - O)).reshape(1, OP)

    use_approx = jnp.dtype(agg_dtype) == jnp.dtype(jnp.bfloat16)
    kernel = functools.partial(_fused_layer_kernel, approx_recip=bool(use_approx))

    n_node_tiles = NP // tn
    slab_bytes = EP * SW * jnp.dtype(agg_dtype).itemsize
    cost = pl.CostEstimate(
        flops=int(2 * 2 * NP * EP * SW + 2 * NP * (2 * SW) * OP),
        transcendentals=int(2 * NP if use_approx else 0),
        bytes_accessed=int(n_node_tiles * (slab_bytes + 2 * EP * 4)
                           + 2 * SW * OP * 4 + OP * 4 + NP * OP * 4))

    grid = (n_node_tiles, EP // te)
    h_pad = pl.pallas_call(
        kernel,
        out_shape=jax.ShapeDtypeStruct((NP, OP), jnp.float32),
        grid_spec=pltpu.PrefetchScalarGridSpec(
            num_scalar_prefetch=0,
            grid=grid,
            in_specs=[
                pl.BlockSpec((1, te), lambda i, k: (0, k)),        # row ids
                pl.BlockSpec((1, te), lambda i, k: (0, k)),        # col ids
                pl.BlockSpec((te, SW), lambda i, k: (k, 0)),       # packed source slab
                pl.BlockSpec((2 * SW, OP), lambda i, k: (0, 0)),   # weight (resident)
                pl.BlockSpec((1, OP), lambda i, k: (0, 0)),        # bias (resident)
            ],
            out_specs=pl.BlockSpec((tn, OP), lambda i, k: (i, 0)),
            scratch_shapes=[pltpu.VMEM((tn, SW), jnp.float32),
                            pltpu.VMEM((tn, SW), jnp.float32)]),
        compiler_params=pltpu.CompilerParams(
            dimension_semantics=("parallel", "arbitrary")),
        cost_estimate=cost,
    )(rid, cid, slab, w_pad, b_pad)

    return h_pad[:N, :O]


def gcn_forward(X, edge_index, y_train, layer_params, *, tn=128, te=2048,
                agg_dtype=jnp.bfloat16):
    # TODO(synk): F.dropout is training-only; this forward is inference mode (no-op).
    row = edge_index[0].astype(jnp.int32)
    col = edge_index[1].astype(jnp.int32)
    h = X
    for params in layer_params:
        h = fused_conv_layer(h, row, col, y_train, params, tn=tn, te=te,
                             agg_dtype=agg_dtype)
    return h


# ---------------------------------------------------------------------------
# Deterministic parameter init (mirrors Convolution.reset_parameters)
# ---------------------------------------------------------------------------
def init_conv_params(key, in_channels, out_channels, num_labels):
    stdv_w = 1.0 / (in_channels ** 0.5)
    stdv_t = 1.0 / (num_labels ** 0.5)
    k1, k2, k3 = jax.random.split(key, 3)
    weight = jax.random.uniform(k1, (in_channels, out_channels), jnp.float32, -stdv_w, stdv_w)
    bias = jax.random.uniform(k2, (out_channels,), jnp.float32, -stdv_w, stdv_w)
    trans_weight = jax.random.uniform(k3, (num_labels, in_channels // 4), jnp.float32,
                                      -stdv_t, stdv_t)
    return {"weight": weight, "bias": bias, "trans_weight": trans_weight}


# ---------------------------------------------------------------------------
# Pure-JAX reference (for correctness check)
# ---------------------------------------------------------------------------
def ref_scatter_mean(src, idx, n):
    sums = jax.ops.segment_sum(src, idx, num_segments=n)
    cnt = jax.ops.segment_sum(jnp.ones((src.shape[0], 1), jnp.float32), idx, num_segments=n)
    return sums / jnp.maximum(cnt, 1.0)


def ref_layer(x, row, col, y, p):
    N = x.shape[0]
    elt = y @ p["trans_weight"]
    cat = jnp.concatenate([ref_scatter_mean(x[col], row, N),
                           ref_scatter_mean(elt, row, N),
                           ref_scatter_mean(x[row], col, N),
                           ref_scatter_mean(elt, col, N)], axis=1)
    return jnp.maximum(cat @ p["weight"] + p["bias"], 0.0)


def ref_forward(X, edge_index, y, layer_params):
    row, col = edge_index[0], edge_index[1]
    h = X
    for p in layer_params:
        h = ref_layer(h, row, col, y, p)
    return h


# ---------------------------------------------------------------------------
if __name__ == "__main__":
    N, F_IN, E, NUM_LABELS = 16, 8, 32, 3
    neurons = [16, 8]   # args.layers

    key = jax.random.PRNGKey(0)
    kx, kr, kc, kl, kp0, kp1 = jax.random.split(key, 6)

    X = jax.random.normal(kx, (N, F_IN), jnp.float32)
    row = jax.random.randint(kr, (E,), 0, N, dtype=jnp.int32)
    col = jax.random.randint(kc, (E,), 0, N, dtype=jnp.int32)
    edge_index = jnp.stack([row, col], axis=0)                       # (2, E)
    labels = jax.random.randint(kl, (E,), 0, NUM_LABELS, dtype=jnp.int32)
    y_train = jax.nn.one_hot(labels, NUM_LABELS, dtype=jnp.float32)  # (E, L)

    # base layer: in_channels = 4*F_IN, out = neurons[0]; deep layer: 4*neurons[0] -> neurons[1]
    params = [init_conv_params(kp0, 4 * F_IN, neurons[0], NUM_LABELS),
              init_conv_params(kp1, 4 * neurons[0], neurons[1], NUM_LABELS)]

    ref = ref_forward(X, edge_index, y_train, params)

    # f32 validation path (exact divide, f32 MXU) -- tight parity with the reference.
    out_f32 = jax.block_until_ready(
        gcn_forward(X, edge_index, y_train, params, agg_dtype=jnp.float32))
    assert out_f32.shape == (N, neurons[-1])
    assert jnp.allclose(out_f32, ref, atol=1e-4, rtol=1e-4), "f32 path mismatch vs reference"

    # default bf16 aggregation path (bf16 MXU + EUP approx reciprocal) -- looser parity.
    out = jax.block_until_ready(gcn_forward(X, edge_index, y_train, params))
    assert out.shape == (N, neurons[-1])
    rel = jnp.linalg.norm(out - ref) / jnp.maximum(jnp.linalg.norm(ref), 1e-6)
    assert rel < 3e-2, f"bf16 path relative error too large: {rel}"

    print("KERNEL_OK")
</pallas_src>

<mosaic_0001>
module attributes {stable_mosaic.version = 11 : i64} {
  func.func @_fused_layer_kernel(%arg0: i32, %arg1: i32, %arg2: memref<1x128xi32, #tpu.memory_space<vmem>>, %arg3: memref<1x128xi32, #tpu.memory_space<vmem>>, %arg4: memref<128x128xf32, #tpu.memory_space<vmem>>, %arg5: memref<256x128xf32, #tpu.memory_space<vmem>>, %arg6: memref<1x128xf32, #tpu.memory_space<vmem>>, %arg7: memref<128x128xf32, #tpu.memory_space<vmem>>, %arg8: memref<128x128xf32, #tpu.memory_space<vmem>>, %arg9: memref<128x128xf32, #tpu.memory_space<vmem>>) attributes {dimension_semantics = [#tpu.dimension_semantics<parallel>, #tpu.dimension_semantics<arbitrary>], iteration_bounds = array<i64: 1, 1>, scalar_prefetch = 0 : i64, scratch_operands = 2 : i64, tpu.core_type = #tpu.core_type<tc>, window_params = [{transform_indices = @transform_0, window_bounds = array<i64: 1, 128>}, {transform_indices = @transform_1, window_bounds = array<i64: 1, 128>}, {transform_indices = @transform_2, window_bounds = array<i64: 128, 128>}, {pipeline_mode = #tpu.pipeline_mode<synchronous>, transform_indices = @transform_3, window_bounds = array<i64: 256, 128>}, {pipeline_mode = #tpu.pipeline_mode<synchronous>, transform_indices = @transform_4, window_bounds = array<i64: 1, 128>}, {transform_indices = @transform_5, window_bounds = array<i64: 128, 128>}]} {
    %c0_i32 = arith.constant 0 : i32
    %0 = arith.cmpi eq, %arg1, %c0_i32 : i32
    %1 = arith.extui %0 : i1 to i32
    %c0_i32_0 = arith.constant 0 : i32
    %2 = arith.cmpi ne, %1, %c0_i32_0 : i32
    scf.if %2 {
      %cst_17 = arith.constant 0.000000e+00 : f32
      %31 = vector.broadcast %cst_17 : f32 to vector<128x128xf32>
      %c0_18 = arith.constant 0 : index
      %c0_19 = arith.constant 0 : index
      %32 = vector.load %arg8[%c0_18, %c0_19] : memref<128x128xf32, #tpu.memory_space<vmem>>, vector<128x128xf32>
      tpu.vector_store %arg8[%c0_18, %c0_19], %31 {strides = array<i32>} : memref<128x128xf32, #tpu.memory_space<vmem>>, vector<128x128xf32>,
      %cst_20 = arith.constant 0.000000e+00 : f32
      %33 = vector.broadcast %cst_20 : f32 to vector<128x128xf32>
      %c0_21 = arith.constant 0 : index
      %c0_22 = arith.constant 0 : index
      %34 = vector.load %arg9[%c0_21, %c0_22] : memref<128x128xf32, #tpu.memory_space<vmem>>, vector<128x128xf32>
      tpu.vector_store %arg9[%c0_21, %c0_22], %33 {strides = array<i32>} : memref<128x128xf32, #tpu.memory_space<vmem>>, vector<128x128xf32>,
    } else {
    }
    %c128_i32 = arith.constant 128 : i32
    %3 = arith.muli %arg0, %c128_i32 : i32
    %c0 = arith.constant 0 : index
    %c0_1 = arith.constant 0 : index
    %4 = vector.load %arg2[%c0, %c0_1] : memref<1x128xi32, #tpu.memory_space<vmem>>, vector<1x128xi32>
    %5 = vector.broadcast %3 : i32 to vector<1x128xi32>
    %6 = arith.subi %4, %5 : vector<1x128xi32>
    %c0_2 = arith.constant 0 : index
    %c0_3 = arith.constant 0 : index
    %7 = vector.load %arg3[%c0_2, %c0_3] : memref<1x128xi32, #tpu.memory_space<vmem>>, vector<1x128xi32>
    %8 = vector.broadcast %3 : i32 to vector<1x128xi32>
    %9 = arith.subi %7, %8 : vector<1x128xi32>
    %10 = tpu.iota {dimensions = array<i32: 0>} : vector<128x128xi32>
    %c0_4 = arith.constant 0 : index
    %c0_5 = arith.constant 0 : index
    %11 = vector.load %arg4[%c0_4, %c0_5] : memref<128x128xf32, #tpu.memory_space<vmem>>, vector<128x128xf32>
    %12 = vector.broadcast %6 : vector<1x128xi32> to vector<128x128xi32>
    %13 = arith.cmpi eq, %10, %12 : vector<128x128xi32>
    %14 = arith.extui %13 : vector<128x128xi1> to vector<128x128xi32>
    %15 = arith.sitofp %14 : vector<128x128xi32> to vector<128x128xf32>
    %16 = vector.broadcast %9 : vector<1x128xi32> to vector<128x128xi32>
    %17 = arith.cmpi eq, %10, %16 : vector<128x128xi32>
    %18 = arith.extui %17 : vector<128x128xi1> to vector<128x128xi32>
    %19 = arith.sitofp %18 : vector<128x128xi32> to vector<128x128xf32>
    %c0_6 = arith.constant 0 : index
    %c0_7 = arith.constant 0 : index
    %20 = vector.load %arg8[%c0_6, %c0_7] : memref<128x128xf32, #tpu.memory_space<vmem>>, vector<128x128xf32>
    %cst = arith.constant dense<0.000000e+00> : vector<128x128xf32>
    %21 = tpu.matmul %15, %11, %cst {dimension_numbers = #tpu.dot_dimension_numbers<[1], [0], [0], [1], [0, 0, 1, 1], [], []>} : vector<128x128xf32>, vector<128x128xf32>, vector<128x128xf32> -> vector<128x128xf32>
    %22 = arith.addf %20, %21 : vector<128x128xf32>
    %c0_8 = arith.constant 0 : index
    %c0_9 = arith.constant 0 : index
    %23 = vector.load %arg8[%c0_8, %c0_9] : memref<128x128xf32, #tpu.memory_space<vmem>>, vector<128x128xf32>
    tpu.vector_store %arg8[%c0_8, %c0_9], %22 {strides = array<i32>} : memref<128x128xf32, #tpu.memory_space<vmem>>, vector<128x128xf32>,
    %c0_10 = arith.constant 0 : index
    %c0_11 = arith.constant 0 : index
    %24 = vector.load %arg9[%c0_10, %c0_11] : memref<128x128xf32, #tpu.memory_space<vmem>>, vector<128x128xf32>
    %cst_12 = arith.constant dense<0.000000e+00> : vector<128x128xf32>
    %25 = tpu.matmul %19, %11, %cst_12 {dimension_numbers = #tpu.dot_dimension_numbers<[1], [0], [0], [1], [0, 0, 1, 1], [], []>} : vector<128x128xf32>, vector<128x128xf32>, vector<128x128xf32> -> vector<128x128xf32>
    %26 = arith.addf %24, %25 : vector<128x128xf32>
    %c0_13 = arith.constant 0 : index
    %c0_14 = arith.constant 0 : index
    %27 = vector.load %arg9[%c0_13, %c0_14] : memref<128x128xf32, #tpu.memory_space<vmem>>, vector<128x128xf32>
    tpu.vector_store %arg9[%c0_13, %c0_14], %26 {strides = array<i32>} : memref<128x128xf32, #tpu.memory_space<vmem>>, vector<128x128xf32>,
    %c0_i32_15 = arith.constant 0 : i32
    %28 = arith.cmpi eq, %arg1, %c0_i32_15 : i32
    %29 = arith.extui %28 : i1 to i32
    %c0_i32_16 = arith.constant 0 : i32
    %30 = arith.cmpi ne, %29, %c0_i32_16 : i32
    scf.if %30 {
      %c0_17 = arith.constant 0 : index
      %c0_18 = arith.constant 0 : index
      %31 = vector.load %arg8[%c0_17, %c0_18] : memref<128x128xf32, #tpu.memory_space<vmem>>, vector<128x128xf32>
      %c0_19 = arith.constant 0 : index
      %c0_20 = arith.constant 0 : index
      %32 = vector.load %arg9[%c0_19, %c0_20] : memref<128x128xf32, #tpu.memory_space<vmem>>, vector<128x128xf32>
      %33 = vector.extract_strided_slice %31 {offsets = [0, 127], sizes = [128, 1], strides = [1, 1]} : vector<128x128xf32> to vector<128x1xf32>
      %cst_21 = arith.constant 1.000000e+00 : f32
      %34 = vector.broadcast %cst_21 : f32 to vector<128x1xf32>
      %35 = arith.maximumf %33, %34 : vector<128x1xf32>
      %36 = vector.extract_strided_slice %32 {offsets = [0, 127], sizes = [128, 1], strides = [1, 1]} : vector<128x128xf32> to vector<128x1xf32>
      %cst_22 = arith.constant 1.000000e+00 : f32
      %37 = vector.broadcast %cst_22 : f32 to vector<128x1xf32>
      %38 = arith.maximumf %36, %37 : vector<128x1xf32>
      %39 = vector.broadcast %35 : vector<128x1xf32> to vector<128x128xf32>
      %40 = arith.divf %31, %39 : vector<128x128xf32>
      %41 = vector.broadcast %38 : vector<128x1xf32> to vector<128x128xf32>
      %42 = arith.divf %32, %41 : vector<128x128xf32>
      %43 = tpu.concatenate %40, %42 in 1 : vector<128x128xf32>, vector<128x128xf32> -> vector<128x256xf32>
      %c0_23 = arith.constant 0 : index
      %c0_24 = arith.constant 0 : index
      %44 = vector.load %arg5[%c0_23, %c0_24] : memref<256x128xf32, #tpu.memory_space<vmem>>, vector<256x128xf32>
      %cst_25 = arith.constant dense<0.000000e+00> : vector<128x128xf32>
      %45 = tpu.matmul %43, %44, %cst_25 {dimension_numbers = #tpu.dot_dimension_numbers<[1], [0], [0], [1], [0, 0, 1, 1], [], []>} : vector<128x256xf32>, vector<256x128xf32>, vector<128x128xf32> -> vector<128x128xf32>
      %c0_26 = arith.constant 0 : index
      %c0_27 = arith.constant 0 : index
      %46 = vector.load %arg6[%c0_26, %c0_27] : memref<1x128xf32, #tpu.memory_space<vmem>>, vector<1x128xf32>
      %47 = vector.broadcast %46 : vector<1x128xf32> to vector<128x128xf32>
      %48 = arith.addf %45, %47 : vector<128x128xf32>
      %cst_28 = arith.constant 0.000000e+00 : f32
      %49 = vector.broadcast %cst_28 : f32 to vector<128x128xf32>
      %50 = arith.maximumf %48, %49 : vector<128x128xf32>
      %c0_29 = arith.constant 0 : index
      %c0_30 = arith.constant 0 : index
      %51 = vector.load %arg7[%c0_29, %c0_30] : memref<128x128xf32, #tpu.memory_space<vmem>>, vector<128x128xf32>
      tpu.vector_store %arg7[%c0_29, %c0_30], %50 {strides = array<i32>} : memref<128x128xf32, #tpu.memory_space<vmem>>, vector<128x128xf32>,
    } else {
    }
    return
  }
  func.func @transform_0(%arg0: i32, %arg1: i32) -> (i32, i32) {
    %c0_i32 = arith.constant 0 : i32
    %c0_i32_0 = arith.constant 0 : i32
    return %c0_i32, %arg1 : i32, i32
  }
  func.func @transform_1(%arg0: i32, %arg1: i32) -> (i32, i32) {
    %c0_i32 = arith.constant 0 : i32
    %c0_i32_0 = arith.constant 0 : i32
    return %c0_i32, %arg1 : i32, i32
  }
  func.func @transform_2(%arg0: i32, %arg1: i32) -> (i32, i32) {
    %c0_i32 = arith.constant 0 : i32
    %c0_i32_0 = arith.constant 0 : i32
    return %arg1, %c0_i32 : i32, i32
  }
  func.func @transform_3(%arg0: i32, %arg1: i32) -> (i32, i32) {
    %c0_i32 = arith.constant 0 : i32
    %c0_i32_0 = arith.constant 0 : i32
    %c0_i32_1 = arith.constant 0 : i32
    return %c0_i32, %c0_i32_0 : i32, i32
  }
  func.func @transform_4(%arg0: i32, %arg1: i32) -> (i32, i32) {
    %c0_i32 = arith.constant 0 : i32
    %c0_i32_0 = arith.constant 0 : i32
    %c0_i32_1 = arith.constant 0 : i32
    return %c0_i32, %c0_i32_0 : i32, i32
  }
  func.func @transform_5(%arg0: i32, %arg1: i32) -> (i32, i32) {
    %c0_i32 = arith.constant 0 : i32
    %c0_i32_0 = arith.constant 0 : i32
    return %arg0, %c0_i32 : i32, i32
  }
}

</mosaic_0001>

<llo_original>
// kernel: tpu_custom_call.1
$region0: #{tpu_custom_call.1}
  #allocation0 [shape = 'u32[]', space=smem, size = 0x4, offset = 0x4, fixed_abs, tag = 'smem constant byte address 0x4 - core index']
  #allocation1 [shape = 'u32[144,128]{1,0:T(1,128)}', space=vmem, size = 0x12000, scoped, tag = 'internal scratch']
  #allocation2 [shape = 'f32[128,128]{1,0:T(8,128)}', space=vmem, size = 0x10000, scoped, tag = 'scratch operand']
  #allocation3 [shape = 'f32[128,128]{1,0:T(8,128)}', space=vmem, size = 0x10000, scoped, tag = 'scratch operand']
  %s0 = inlined_call_operand.hbm [shape: s32[1,128], index: 0, kind: input, shape index: {}]
  %s1 = inlined_call_operand.vmem [shape: s32[1,128], index: 1, kind: input, shape index: {}]
  %s2 = inlined_call_operand.hbm [shape: f32[128,128], index: 2, kind: input, shape index: {}]
  %s3 = inlined_call_operand.hbm [shape: f32[256,128], index: 3, kind: input, shape index: {}]
  %s4 = inlined_call_operand.vmem [shape: f32[1,128], index: 4, kind: input, shape index: {}]
  %s5 = inlined_call_operand.hbm [shape: f32[128,128], index: 5, kind: output, shape index: {}]
  %s6 = sld [smem:[#allocation0]]
  $region50: #{tpu_custom_call.1} parent=0
    _
  %s8 = ssub.s32 1, %s6
  %s9 = scalar_select 0, %s8, %s6
  $region1: #{tpu_custom_call.1} parent=0
    #allocation4 [shape = 'u8[512]{0}', space=vmem, size = 0x400, scoped, tag = 'input window, operand 0, single buffered']
    #allocation5 [shape = 's32[1]{0}', space=sflag, size = 0x4, scoped, tag = 'scoped memory for tpu_custom_call.1']
    #allocation6 [shape = 's32[1]{0}', space=sflag, size = 0x4, scoped, tag = 'scoped memory for tpu_custom_call.1']
    #allocation7 [shape = 'u8[65536]{0}', space=vmem, size = 0x10000, scoped, tag = 'input window, operand 2, single buffered']
    #allocation8 [shape = 's32[1]{0}', space=sflag, size = 0x4, scoped, tag = 'scoped memory for tpu_custom_call.1']
    #allocation9 [shape = 'u8[131072]{0}', space=vmem, size = 0x20000, scoped, tag = 'input window, operand 3, single buffered']
    #allocation10 [shape = 'u8[65536]{0}', space=vmem, size = 0x10000, scoped, tag = 'output window, operand 0, single buffered']
    %10 = vsyncpa [#allocation5], 0
    %11 = vsyncpa [#allocation8], 0
    %12 = vsyncpa [#allocation6], 0
    // Predicated region
    $region2: #{tpu_custom_call.1} parent=1 // pred_check
      _
    $region3: #{tpu_custom_call.1} parent=1 // pred_check_branch
      %14 = sbr.rel (0) target = $region5
    $region4: #{tpu_custom_call.1} parent=1 // pred_region
      %s16 = ssub.s32 16, 16
      %17 = vsyncadd [#allocation5], %s16
      %s19 = sshll.u32 [#allocation4], 4
      %s20 = int_to_ptr.vmem [resolvable:$true] %s19
      %22 = dma.hbm_to_vmem [thread:$0]  %s0, 16, %s20, [#allocation5]
    $region5: #{tpu_custom_call.1} parent=1 // pred_fallthru
      _
    // Predicated region
    $region6: #{tpu_custom_call.1} parent=1 // pred_check
      _
    $region7: #{tpu_custom_call.1} parent=1 // pred_check_branch
      %24 = sbr.rel (0) target = $region9
    $region8: #{tpu_custom_call.1} parent=1 // pred_region
      _
    $region9: #{tpu_custom_call.1} parent=1 // pred_fallthru
      _
    // Predicated region
    $region10: #{tpu_custom_call.1} parent=1 // pred_check
      _
    $region11: #{tpu_custom_call.1} parent=1 // pred_check_branch
      %26 = sbr.rel (0) target = $region13
    $region12: #{tpu_custom_call.1} parent=1 // pred_region
      %s28 = ssub.s32 2048, 2048
      %29 = vsyncadd [#allocation8], %s28
      %s30 = sshll.u32 [#allocation7], 4
      %s31 = int_to_ptr.vmem [resolvable:$true] %s30
      %36 = dma.hbm_to_vmem [thread:$0]  %s2, 2048, %s31, [#allocation8], 128, 128, 8
    $region13: #{tpu_custom_call.1} parent=1 // pred_fallthru
      _
    // Predicated region
    $region14: #{tpu_custom_call.1} parent=1 // pred_check
      _
    $region15: #{tpu_custom_call.1} parent=1 // pred_check_branch
      %38 = sbr.rel (0) target = $region17
    $region16: #{tpu_custom_call.1} parent=1 // pred_region
      %s40 = ssub.s32 4096, 4096
      %41 = vsyncadd [#allocation8], %s40
      %s42 = sshll.u32 [#allocation9], 4
      %s43 = int_to_ptr.vmem [resolvable:$true] %s42
      %48 = dma.hbm_to_vmem [thread:$0]  %s3, 4096, %s43, [#allocation8], 128, 128, 8
    $region17: #{tpu_custom_call.1} parent=1 // pred_fallthru
      _
    // Predicated region
    $region18: #{tpu_custom_call.1} parent=1 // pred_check
      _
    $region19: #{tpu_custom_call.1} parent=1 // pred_check_branch
      %50 = sbr.rel (0) target = $region21
    $region20: #{tpu_custom_call.1} parent=1 // pred_region
      _
    $region21: #{tpu_custom_call.1} parent=1 // pred_fallthru
      _
    // Predicated region
    $region22: #{tpu_custom_call.1} parent=1 // pred_check
      _
    $region23: #{tpu_custom_call.1} parent=1 // pred_check_branch
      %52 = sbr.rel (0) target = $region25
    $region24: #{tpu_custom_call.1} parent=1 // pred_region
      %53 = dma.done [#allocation5], 16
    $region25: #{tpu_custom_call.1} parent=1 // pred_fallthru
      _
    // Predicated region
    $region26: #{tpu_custom_call.1} parent=1 // pred_check
      _
    $region27: #{tpu_custom_call.1} parent=1 // pred_check_branch
      %55 = sbr.rel (0) target = $region29
    $region28: #{tpu_custom_call.1} parent=1 // pred_region
      %56 = dma.done [#allocation8], 2048
    $region29: #{tpu_custom_call.1} parent=1 // pred_fallthru
      _
    // Predicated region
    $region30: #{tpu_custom_call.1} parent=1 // pred_check
      _
    $region31: #{tpu_custom_call.1} parent=1 // pred_check_branch
      %58 = sbr.rel (0) target = $region33
    $region32: #{tpu_custom_call.1} parent=1 // pred_region
      %59 = dma.done [#allocation8], 4096
    $region33: #{tpu_custom_call.1} parent=1 // pred_fallthru
      _
    %p60 = scmp.eq.s32.totalorder 0, 0
    // Predicated region
    $region34: #{tpu_custom_call.1} parent=1 // pred_check
      %p61 = pneg %p60
    $region35: #{tpu_custom_call.1} parent=1 // pred_check_branch
      %63 = sbr.rel (%p61) target = $region37
    $region36: #{tpu_custom_call.1} parent=1 // pred_region
      %64 = vst [vmem:[#allocation2] sm:$0xff] 0.0
      %65 = vst [vmem:[#allocation2 + $0x8] sm:$0xff] 0.0
      %66 = vst [vmem:[#allocation2 + $0x10] sm:$0xff] 0.0
      %67 = vst [vmem:[#allocation2 + $0x18] sm:$0xff] 0.0
      %68 = vst [vmem:[#allocation2 + $0x20] sm:$0xff] 0.0
      %69 = vst [vmem:[#allocation2 + $0x28] sm:$0xff] 0.0
      %70 = vst [vmem:[#allocation2 + $0x30] sm:$0xff] 0.0
      %71 = vst [vmem:[#allocation2 + $0x38] sm:$0xff] 0.0
      %72 = vst [vmem:[#allocation2 + $0x40] sm:$0xff] 0.0
      %73 = vst [vmem:[#allocation2 + $0x48] sm:$0xff] 0.0
      %74 = vst [vmem:[#allocation2 + $0x50] sm:$0xff] 0.0
      %75 = vst [vmem:[#allocation2 + $0x58] sm:$0xff] 0.0
      %76 = vst [vmem:[#allocation2 + $0x60] sm:$0xff] 0.0
      %77 = vst [vmem:[#allocation2 + $0x68] sm:$0xff] 0.0
      %78 = vst [vmem:[#allocation2 + $0x70] sm:$0xff] 0.0
      %79 = vst [vmem:[#allocation2 + $0x78] sm:$0xff] 0.0
      %80 = vst [vmem:[#allocation3] sm:$0xff] 0.0
      %81 = vst [vmem:[#allocation3 + $0x8] sm:$0xff] 0.0
      %82 = vst [vmem:[#allocation3 + $0x10] sm:$0xff] 0.0
      %83 = vst [vmem:[#allocation3 + $0x18] sm:$0xff] 0.0
      %84 = vst [vmem:[#allocation3 + $0x20] sm:$0xff] 0.0
      %85 = vst [vmem:[#allocation3 + $0x28] sm:$0xff] 0.0
      %86 = vst [vmem:[#allocation3 + $0x30] sm:$0xff] 0.0
      %87 = vst [vmem:[#allocation3 + $0x38] sm:$0xff] 0.0
      %88 = vst [vmem:[#allocation3 + $0x40] sm:$0xff] 0.0
      %89 = vst [vmem:[#allocation3 + $0x48] sm:$0xff] 0.0
      %90 = vst [vmem:[#allocation3 + $0x50] sm:$0xff] 0.0
      %91 = vst [vmem:[#allocation3 + $0x58] sm:$0xff] 0.0
      %92 = vst [vmem:[#allocation3 + $0x60] sm:$0xff] 0.0
      %93 = vst [vmem:[#allocation3 + $0x68] sm:$0xff] 0.0
      %94 = vst [vmem:[#allocation3 + $0x70] sm:$0xff] 0.0
      %95 = vst [vmem:[#allocation3 + $0x78] sm:$0xff] 0.0
    $region37: #{tpu_custom_call.1} parent=1 // pred_fallthru
      _
    %s96 = smul.u32 0, 128
    %v97 = vld [vmem:[#allocation4] sm:$0x1]
    %v98 = vstv %s96
    %v99 = vsub.s32 %v97, %v98
    %v100 = vld [vmem:[%s1] sm:$0x1]
    %v101 = vsub.s32 %v100, %v98
    %v102 = vlaneseq
    %v103 = vshrl.u32 %v102, 7
    %v104 = vadd.s32 %v103, 8
    %v105 = vadd.s32 %v103, 16
    %v106 = vadd.s32 %v103, 24
    %v107 = vadd.s32 %v103, 32
    %v108 = vadd.s32 %v103, 40
    %v109 = vadd.s32 %v103, 48
    %v110 = vadd.s32 %v103, 56
    %v111 = vadd.s32 %v103, 64
    %v112 = vadd.s32 %v103, 72
    %v113 = vadd.s32 %v103, 80
    %v114 = vadd.s32 %v103, 88
    %v115 = vadd.s32 %v103, 96
    %v116 = vadd.s32 %v103, 104
    %v117 = vadd.s32 %v103, 112
    %v118 = vadd.s32 %v103, 120
    %v119 = vld [vmem:[#allocation7] sm:$0xff]
    %v120 = vld [vmem:[#allocation7 + $0x8] sm:$0xff]
    %v121 = vld [vmem:[#allocation7 + $0x10] sm:$0xff]
    %v122 = vld [vmem:[#allocation7 + $0x18] sm:$0xff]
    %v123 = vld [vmem:[#allocation7 + $0x20] sm:$0xff]
    %v124 = vld [vmem:[#allocation7 + $0x28] sm:$0xff]
    %v125 = vld [vmem:[#allocation7 + $0x30] sm:$0xff]
    %v126 = vld [vmem:[#allocation7 + $0x38] sm:$0xff]
    %v127 = vld [vmem:[#allocation7 + $0x40] sm:$0xff]
    %v128 = vld [vmem:[#allocation7 + $0x48] sm:$0xff]
    %v129 = vld [vmem:[#allocation7 + $0x50] sm:$0xff]
    %v130 = vld [vmem:[#allocation7 + $0x58] sm:$0xff]
    %v131 = vld [vmem:[#allocation7 + $0x60] sm:$0xff]
    %v132 = vld [vmem:[#allocation7 + $0x68] sm:$0xff]
    %v133 = vld [vmem:[#allocation7 + $0x70] sm:$0xff]
    %v134 = vld [vmem:[#allocation7 + $0x78] sm:$0xff]
    %v135 = vlaneseq
    %v136 = vshrl.u32 %v135, 7
    %v137 = vsub.s32 0, %v136
    %v138 = vrot.slane %v99, %v137
    %vm139 = vcmp.eq.s32.totalorder %v103, %v138
    %vm140 = vcmp.eq.s32.totalorder %v104, %v138
    %vm141 = vcmp.eq.s32.totalorder %v105, %v138
    %vm142 = vcmp.eq.s32.totalorder %v106, %v138
    %vm143 = vcmp.eq.s32.totalorder %v107, %v138
    %vm144 = vcmp.eq.s32.totalorder %v108, %v138
    %vm145 = vcmp.eq.s32.totalorder %v109, %v138
    %vm146 = vcmp.eq.s32.totalorder %v110, %v138
    %vm147 = vcmp.eq.s32.totalorder %v111, %v138
    %vm148 = vcmp.eq.s32.totalorder %v112, %v138
    %vm149 = vcmp.eq.s32.totalorder %v113, %v138
    %vm150 = vcmp.eq.s32.totalorder %v114, %v138
    %vm151 = vcmp.eq.s32.totalorder %v115, %v138
    %vm152 = vcmp.eq.s32.totalorder %v116, %v138
    %vm153 = vcmp.eq.s32.totalorder %v117, %v138
    %vm154 = vcmp.eq.s32.totalorder %v118, %v138
    %v155 = vsel %vm139, 1, 0
    %v156 = vsel %vm140, 1, 0
    %v157 = vsel %vm141, 1, 0
    %v158 = vsel %vm142, 1, 0
    %v159 = vsel %vm143, 1, 0
    %v160 = vsel %vm144, 1, 0
    %v161 = vsel %vm145, 1, 0
    %v162 = vsel %vm146, 1, 0
    %v163 = vsel %vm147, 1, 0
    %v164 = vsel %vm148, 1, 0
    %v165 = vsel %vm149, 1, 0
    %v166 = vsel %vm150, 1, 0
    %v167 = vsel %vm151, 1, 0
    %v168 = vsel %vm152, 1, 0
    %v169 = vsel %vm153, 1, 0
    %v170 = vsel %vm154, 1, 0
    %v171 = vcvt.s32.f32 %v155
    %v172 = vcvt.s32.f32 %v156
    %v173 = vcvt.s32.f32 %v157
    %v174 = vcvt.s32.f32 %v158
    %v175 = vcvt.s32.f32 %v159
    %v176 = vcvt.s32.f32 %v160
    %v177 = vcvt.s32.f32 %v161
    %v178 = vcvt.s32.f32 %v162
    %v179 = vcvt.s32.f32 %v163
    %v180 = vcvt.s32.f32 %v164
    %v181 = vcvt.s32.f32 %v165
    %v182 = vcvt.s32.f32 %v166
    %v183 = vcvt.s32.f32 %v167
    %v184 = vcvt.s32.f32 %v168
    %v185 = vcvt.s32.f32 %v169
    %v186 = vcvt.s32.f32 %v170
    %v187 = vlaneseq
    %v188 = vshrl.u32 %v187, 7
    %v189 = vsub.s32 0, %v188
    %v190 = vrot.slane %v101, %v189
    %vm191 = vcmp.eq.s32.totalorder %v103, %v190
    %vm192 = vcmp.eq.s32.totalorder %v104, %v190
    %vm193 = vcmp.eq.s32.totalorder %v105, %v190
    %vm194 = vcmp.eq.s32.totalorder %v106, %v190
    %vm195 = vcmp.eq.s32.totalorder %v107, %v190
    %vm196 = vcmp.eq.s32.totalorder %v108, %v190
    %vm197 = vcmp.eq.s32.totalorder %v109, %v190
    %vm198 = vcmp.eq.s32.totalorder %v110, %v190
    %vm199 = vcmp.eq.s32.totalorder %v111, %v190
    %vm200 = vcmp.eq.s32.totalorder %v112, %v190
    %vm201 = vcmp.eq.s32.totalorder %v113, %v190
    %vm202 = vcmp.eq.s32.totalorder %v114, %v190
    %vm203 = vcmp.eq.s32.totalorder %v115, %v190
    %vm204 = vcmp.eq.s32.totalorder %v116, %v190
    %vm205 = vcmp.eq.s32.totalorder %v117, %v190
    %vm206 = vcmp.eq.s32.totalorder %v118, %v190
    %v207 = vsel %vm191, 1, 0
    %v208 = vsel %vm192, 1, 0
    %v209 = vsel %vm193, 1, 0
    %v210 = vsel %vm194, 1, 0
    %v211 = vsel %vm195, 1, 0
    %v212 = vsel %vm196, 1, 0
    %v213 = vsel %vm197, 1, 0
    %v214 = vsel %vm198, 1, 0
    %v215 = vsel %vm199, 1, 0
    %v216 = vsel %vm200, 1, 0
    %v217 = vsel %vm201, 1, 0
    %v218 = vsel %vm202, 1, 0
    %v219 = vsel %vm203, 1, 0
    %v220 = vsel %vm204, 1, 0
    %v221 = vsel %vm205, 1, 0
    %v222 = vsel %vm206, 1, 0
    %v223 = vcvt.s32.f32 %v207
    %v224 = vcvt.s32.f32 %v208
    %v225 = vcvt.s32.f32 %v209
    %v226 = vcvt.s32.f32 %v210
    %v227 = vcvt.s32.f32 %v211
    %v228 = vcvt.s32.f32 %v212
    %v229 = vcvt.s32.f32 %v213
    %v230 = vcvt.s32.f32 %v214
    %v231 = vcvt.s32.f32 %v215
    %v232 = vcvt.s32.f32 %v216
    %v233 = vcvt.s32.f32 %v217
    %v234 = vcvt.s32.f32 %v218
    %v235 = vcvt.s32.f32 %v219
    %v236 = vcvt.s32.f32 %v220
    %v237 = vcvt.s32.f32 %v221
    %v238 = vcvt.s32.f32 %v222
    %v239 = vld [vmem:[#allocation2] sm:$0xff]
    %v240 = vld [vmem:[#allocation2 + $0x8] sm:$0xff]
    %v241 = vld [vmem:[#allocation2 + $0x10] sm:$0xff]
    %v242 = vld [vmem:[#allocation2 + $0x18] sm:$0xff]
    %v243 = vld [vmem:[#allocation2 + $0x20] sm:$0xff]
    %v244 = vld [vmem:[#allocation2 + $0x28] sm:$0xff]
    %v245 = vld [vmem:[#allocation2 + $0x30] sm:$0xff]
    %v246 = vld [vmem:[#allocation2 + $0x38] sm:$0xff]
    %v247 = vld [vmem:[#allocation2 + $0x40] sm:$0xff]
    %v248 = vld [vmem:[#allocation2 + $0x48] sm:$0xff]
    %v249 = vld [vmem:[#allocation2 + $0x50] sm:$0xff]
    %v250 = vld [vmem:[#allocation2 + $0x58] sm:$0xff]
    %v251 = vld [vmem:[#allocation2 + $0x60] sm:$0xff]
    %v252 = vld [vmem:[#allocation2 + $0x68] sm:$0xff]
    %v253 = vld [vmem:[#allocation2 + $0x70] sm:$0xff]
    %v254 = vld [vmem:[#allocation2 + $0x78] sm:$0xff]
    %255 = vmatprep.subr.mxu0 0.0
    %256 = vmatpush1.msra.mxu0 %v119
    %257 = vmatprep.subr.mxu0 0.0
    %258 = vmatpush1.msra.mxu0 %v120
    %259 = vmatprep.subr.mxu0 0.0
    %260 = vmatpush1.msra.mxu0 %v121
    %261 = vmatprep.subr.mxu0 0.0
    %262 = vmatpush1.msra.mxu0 %v122
    %263 = vmatprep.subr.mxu0 0.0
    %264 = vmatpush1.msra.mxu0 %v123
    %265 = vmatprep.subr.mxu0 0.0
    %266 = vmatpush1.msra.mxu0 %v124
    %267 = vmatprep.subr.mxu0 0.0
    %268 = vmatpush1.msra.mxu0 %v125
    %269 = vmatprep.subr.mxu0 0.0
    %270 = vmatpush1.msra.mxu0 %v126
    %271 = vmatprep.subr.mxu0 0.0
    %272 = vmatpush1.msra.mxu0 %v127
    %273 = vmatprep.subr.mxu0 0.0
    %274 = vmatpush1.msra.mxu0 %v128
    %275 = vmatprep.subr.mxu0 0.0
    %276 = vmatpush1.msra.mxu0 %v129
    %277 = vmatprep.subr.mxu0 0.0
    %278 = vmatpush1.msra.mxu0 %v130
    %279 = vmatprep.subr.mxu0 0.0
    %280 = vmatpush1.msra.mxu0 %v131
    %281 = vmatprep.subr.mxu0 0.0
    %282 = vmatpush1.msra.mxu0 %v132
    %283 = vmatprep.subr.mxu0 0.0
    %284 = vmatpush1.msra.mxu0 %v133
    %285 = vmatprep.subr.mxu0 0.0
    %286 = vmatpush1.msra.mxu0 %v134
    %287 = vmatprep.subr.mxu0 0.0
    %288 = vmatpush1.msra.mxu0 0.0
    %289 = vmatprep.subr.mxu0 0.0
    %290 = vmatpush1.msra.mxu0 0.0
    %291 = vmatprep.subr.mxu0 0.0
    %292 = vmatpush1.msra.mxu0 0.0
    %293 = vmatprep.subr.mxu0 0.0
    %294 = vmatpush1.msra.mxu0 0.0
    %295 = vmatprep.subr.mxu0 0.0
    %296 = vmatpush1.msra.mxu0 0.0
    %297 = vmatprep.subr.mxu0 0.0
    %298 = vmatpush1.msra.mxu0 0.0
    %299 = vmatprep.subr.mxu0 0.0
    %300 = vmatpush1.msra.mxu0 0.0
    %301 = vmatprep.subr.mxu0 0.0
    %302 = vmatpush1.msra.mxu0 0.0
    %303 = vmatprep.subr.mxu0 0.0
    %304 = vmatpush1.msra.mxu0 0.0
    %305 = vmatprep.subr.mxu0 0.0
    %306 = vmatpush1.msra.mxu0 0.0
    %307 = vmatprep.subr.mxu0 0.0
    %308 = vmatpush1.msra.mxu0 0.0
    %309 = vmatprep.subr.mxu0 0.0
    %310 = vmatpush1.msra.mxu0 0.0
    %311 = vmatprep.subr.mxu0 0.0
    %312 = vmatpush1.msra.mxu0 0.0
    %313 = vmatprep.subr.mxu0 0.0
    %314 = vmatpush1.msra.mxu0 0.0
    %315 = vmatprep.subr.mxu0 0.0
    %316 = vmatpush1.msra.mxu0 0.0
    %317 = vmatprep.subr.mxu0 0.0
    %318 = vmatpush1.msra.mxu0 0.0
    %319 = vmatprep.mubr.f32.mxu0 0.0
    %320 = vmatmul.mubr.f32.gmra.mrb[0].mxu0 %v171
    %v321 = vpop.f32.mrb[0].mxu0
    %v322 = vadd.f32 0.0, %v321
    %v323 = vpop.f32.mrb[0].mxu0
    %324 = vmatprep.mubr.f32.mxu0 0.0
    %325 = vmatmul.mubr.f32.gmra.mrb[0].mxu0 %v172
    %v326 = vpop.f32.mrb[0].mxu0
    %v327 = vadd.f32 0.0, %v326
    %v328 = vpop.f32.mrb[0].mxu0
    %329 = vmatprep.mubr.f32.mxu0 0.0
    %330 = vmatmul.mubr.f32.gmra.mrb[0].mxu0 %v173
    %v331 = vpop.f32.mrb[0].mxu0
    %v332 = vadd.f32 0.0, %v331
    %v333 = vpop.f32.mrb[0].mxu0
    %334 = vmatprep.mubr.f32.mxu0 0.0
    %335 = vmatmul.mubr.f32.gmra.mrb[0].mxu0 %v174
    %v336 = vpop.f32.mrb[0].mxu0
    %v337 = vadd.f32 0.0, %v336
    %v338 = vpop.f32.mrb[0].mxu0
    %339 = vmatprep.mubr.f32.mxu0 0.0
    %340 = vmatmul.mubr.f32.gmra.mrb[0].mxu0 %v175
    %v341 = vpop.f32.mrb[0].mxu0
    %v342 = vadd.f32 0.0, %v341
    %v343 = vpop.f32.mrb[0].mxu0
    %344 = vmatprep.mubr.f32.mxu0 0.0
    %345 = vmatmul.mubr.f32.gmra.mrb[0].mxu0 %v176
    %v346 = vpop.f32.mrb[0].mxu0
    %v347 = vadd.f32 0.0, %v346
    %v348 = vpop.f32.mrb[0].mxu0
    %349 = vmatprep.mubr.f32.mxu0 0.0
    %350 = vmatmul.mubr.f32.gmra.mrb[0].mxu0 %v177
    %v351 = vpop.f32.mrb[0].mxu0
    %v352 = vadd.f32 0.0, %v351
    %v353 = vpop.f32.mrb[0].mxu0
    %354 = vmatprep.mubr.f32.mxu0 0.0
    %355 = vmatmul.mubr.f32.gmra.mrb[0].mxu0 %v178
    %v356 = vpop.f32.mrb[0].mxu0
    %v357 = vadd.f32 0.0, %v356
    %v358 = vpop.f32.mrb[0].mxu0
    %359 = vmatprep.mubr.f32.mxu0 0.0
    %360 = vmatmul.mubr.f32.gmra.mrb[0].mxu0 %v179
    %v361 = vpop.f32.mrb[0].mxu0
    %v362 = vadd.f32 0.0, %v361
    %v363 = vpop.f32.mrb[0].mxu0
    %364 = vmatprep.mubr.f32.mxu0 0.0
    %365 = vmatmul.mubr.f32.gmra.mrb[0].mxu0 %v180
    %v366 = vpop.f32.mrb[0].mxu0
    %v367 = vadd.f32 0.0, %v366
    %v368 = vpop.f32.mrb[0].mxu0
    %369 = vmatprep.mubr.f32.mxu0 0.0
    %370 = vmatmul.mubr.f32.gmra.mrb[0].mxu0 %v181
    %v371 = vpop.f32.mrb[0].mxu0
    %v372 = vadd.f32 0.0, %v371
    %v373 = vpop.f32.mrb[0].mxu0
    %374 = vmatprep.mubr.f32.mxu0 0.0
    %375 = vmatmul.mubr.f32.gmra.mrb[0].mxu0 %v182
    %v376 = vpop.f32.mrb[0].mxu0
    %v377 = vadd.f32 0.0, %v376
    %v378 = vpop.f32.mrb[0].mxu0
    %379 = vmatprep.mubr.f32.mxu0 0.0
    %380 = vmatmul.mubr.f32.gmra.mrb[0].mxu0 %v183
    %v381 = vpop.f32.mrb[0].mxu0
    %v382 = vadd.f32 0.0, %v381
    %v383 = vpop.f32.mrb[0].mxu0
    %384 = vmatprep.mubr.f32.mxu0 0.0
    %385 = vmatmul.mubr.f32.gmra.mrb[0].mxu0 %v184
    %v386 = vpop.f32.mrb[0].mxu0
    %v387 = vadd.f32 0.0, %v386
    %v388 = vpop.f32.mrb[0].mxu0
    %389 = vmatprep.mubr.f32.mxu0 0.0
    %390 = vmatmul.mubr.f32.gmra.mrb[0].mxu0 %v185
    %v391 = vpop.f32.mrb[0].mxu0
    %v392 = vadd.f32 0.0, %v391
    %v393 = vpop.f32.mrb[0].mxu0
    %394 = vmatprep.mubr.f32.mxu0 0.0
    %395 = vmatmul.mubr.f32.gmra.mrb[0].mxu0 %v186
    %v396 = vpop.f32.mrb[0].mxu0
    %v397 = vadd.f32 0.0, %v396
    %v398 = vpop.f32.mrb[0].mxu0
    %399 = vdwg.mxu0
    %v400 = vadd.f32 %v239, %v322
    %v401 = vadd.f32 %v240, %v327
    %v402 = vadd.f32 %v241, %v332
    %v403 = vadd.f32 %v242, %v337
    %v404 = vadd.f32 %v243, %v342
    %v405 = vadd.f32 %v244, %v347
    %v406 = vadd.f32 %v245, %v352
    %v407 = vadd.f32 %v246, %v357
    %v408 = vadd.f32 %v247, %v362
    %v409 = vadd.f32 %v248, %v367
    %v410 = vadd.f32 %v249, %v372
    %v411 = vadd.f32 %v250, %v377
    %v412 = vadd.f32 %v251, %v382
    %v413 = vadd.f32 %v252, %v387
    %v414 = vadd.f32 %v253, %v392
    %v415 = vadd.f32 %v254, %v397
    %416 = vst [vmem:[#allocation2] sm:$0xff] %v400
    %417 = vst [vmem:[#allocation2 + $0x8] sm:$0xff] %v401
    %418 = vst [vmem:[#allocation2 + $0x10] sm:$0xff] %v402
    %419 = vst [vmem:[#allocation2 + $0x18] sm:$0xff] %v403
    %420 = vst [vmem:[#allocation2 + $0x20] sm:$0xff] %v404
    %421 = vst [vmem:[#allocation2 + $0x28] sm:$0xff] %v405
    %422 = vst [vmem:[#allocation2 + $0x30] sm:$0xff] %v406
    %423 = vst [vmem:[#allocation2 + $0x38] sm:$0xff] %v407
    %424 = vst [vmem:[#allocation2 + $0x40] sm:$0xff] %v408
    %425 = vst [vmem:[#allocation2 + $0x48] sm:$0xff] %v409
    %426 = vst [vmem:[#allocation2 + $0x50] sm:$0xff] %v410
    %427 = vst [vmem:[#allocation2 + $0x58] sm:$0xff] %v411
    %428 = vst [vmem:[#allocation2 + $0x60] sm:$0xff] %v412
    %429 = vst [vmem:[#allocation2 + $0x68] sm:$0xff] %v413
    %430 = vst [vmem:[#allocation2 + $0x70] sm:$0xff] %v414
    %431 = vst [vmem:[#allocation2 + $0x78] sm:$0xff] %v415
    %v432 = vld [vmem:[#allocation3] sm:$0xff]
    %v433 = vld [vmem:[#allocation3 + $0x8] sm:$0xff]
    %v434 = vld [vmem:[#allocation3 + $0x10] sm:$0xff]
    %v435 = vld [vmem:[#allocation3 + $0x18] sm:$0xff]
    %v436 = vld [vmem:[#allocation3 + $0x20] sm:$0xff]
    %v437 = vld [vmem:[#allocation3 + $0x28] sm:$0xff]
    %v438 = vld [vmem:[#allocation3 + $0x30] sm:$0xff]
    %v439 = vld [vmem:[#allocation3 + $0x38] sm:$0xff]
    %v440 = vld [vmem:[#allocation3 + $0x40] sm:$0xff]
    %v441 = vld [vmem:[#allocation3 + $0x48] sm:$0xff]
    %v442 = vld [vmem:[#allocation3 + $0x50] sm:$0xff]
    %v443 = vld [vmem:[#allocation3 + $0x58] sm:$0xff]
    %v444 = vld [vmem:[#allocation3 + $0x60] sm:$0xff]
    %v445 = vld [vmem:[#allocation3 + $0x68] sm:$0xff]
    %v446 = vld [vmem:[#allocation3 + $0x70] sm:$0xff]
    %v447 = vld [vmem:[#allocation3 + $0x78] sm:$0xff]
    %448 = vmatprep.subr.mxu0 0.0
    %449 = vmatpush1.msra.mxu0 %v119
    %450 = vmatprep.subr.mxu0 0.0
    %451 = vmatpush1.msra.mxu0 %v120
    %452 = vmatprep.subr.mxu0 0.0
    %453 = vmatpush1.msra.mxu0 %v121
    %454 = vmatprep.subr.mxu0 0.0
    %455 = vmatpush1.msra.mxu0 %v122
    %456 = vmatprep.subr.mxu0 0.0
    %457 = vmatpush1.msra.mxu0 %v123
    %458 = vmatprep.subr.mxu0 0.0
    %459 = vmatpush1.msra.mxu0 %v124
    %460 = vmatprep.subr.mxu0 0.0
    %461 = vmatpush1.msra.mxu0 %v125
    %462 = vmatprep.subr.mxu0 0.0
    %463 = vmatpush1.msra.mxu0 %v126
    %464 = vmatprep.subr.mxu0 0.0
    %465 = vmatpush1.msra.mxu0 %v127
    %466 = vmatprep.subr.mxu0 0.0
    %467 = vmatpush1.msra.mxu0 %v128
    %468 = vmatprep.subr.mxu0 0.0
    %469 = vmatpush1.msra.mxu0 %v129
    %470 = vmatprep.subr.mxu0 0.0
    %471 = vmatpush1.msra.mxu0 %v130
    %472 = vmatprep.subr.mxu0 0.0
    %473 = vmatpush1.msra.mxu0 %v131
    %474 = vmatprep.subr.mxu0 0.0
    %475 = vmatpush1.msra.mxu0 %v132
    %476 = vmatprep.subr.mxu0 0.0
    %477 = vmatpush1.msra.mxu0 %v133
    %478 = vmatprep.subr.mxu0 0.0
    %479 = vmatpush1.msra.mxu0 %v134
    %480 = vmatprep.subr.mxu0 0.0
    %481 = vmatpush1.msra.mxu0 0.0
    %482 = vmatprep.subr.mxu0 0.0
    %483 = vmatpush1.msra.mxu0 0.0
    %484 = vmatprep.subr.mxu0 0.0
    %485 = vmatpush1.msra.mxu0 0.0
    %486 = vmatprep.subr.mxu0 0.0
    %487 = vmatpush1.msra.mxu0 0.0
    %488 = vmatprep.subr.mxu0 0.0
    %489 = vmatpush1.msra.mxu0 0.0
    %490 = vmatprep.subr.mxu0 0.0
    %491 = vmatpush1.msra.mxu0 0.0
    %492 = vmatprep.subr.mxu0 0.0
    %493 = vmatpush1.msra.mxu0 0.0
    %494 = vmatprep.subr.mxu0 0.0
    %495 = vmatpush1.msra.mxu0 0.0
    %496 = vmatprep.subr.mxu0 0.0
    %497 = vmatpush1.msra.mxu0 0.0
    %498 = vmatprep.subr.mxu0 0.0
    %499 = vmatpush1.msra.mxu0 0.0
    %500 = vmatprep.subr.mxu0 0.0
    %501 = vmatpush1.msra.mxu0 0.0
    %502 = vmatprep.subr.mxu0 0.0
    %503 = vmatpush1.msra.mxu0 0.0
    %504 = vmatprep.subr.mxu0 0.0
    %505 = vmatpush1.msra.mxu0 0.0
    %506 = vmatprep.subr.mxu0 0.0
    %507 = vmatpush1.msra.mxu0 0.0
    %508 = vmatprep.subr.mxu0 0.0
    %509 = vmatpush1.msra.mxu0 0.0
    %510 = vmatprep.subr.mxu0 0.0
    %511 = vmatpush1.msra.mxu0 0.0
    %512 = vmatprep.mubr.f32.mxu0 0.0
    %513 = vmatmul.mubr.f32.gmra.mrb[0].mxu0 %v223
    %v514 = vpop.f32.mrb[0].mxu0
    %v515 = vadd.f32 0.0, %v514
    %v516 = vpop.f32.mrb[0].mxu0
    %517 = vmatprep.mubr.f32.mxu0 0.0
    %518 = vmatmul.mubr.f32.gmra.mrb[0].mxu0 %v224
    %v519 = vpop.f32.mrb[0].mxu0
    %v520 = vadd.f32 0.0, %v519
    %v521 = vpop.f32.mrb[0].mxu0
    %522 = vmatprep.mubr.f32.mxu0 0.0
    %523 = vmatmul.mubr.f32.gmra.mrb[0].mxu0 %v225
    %v524 = vpop.f32.mrb[0].mxu0
    %v525 = vadd.f32 0.0, %v524
    %v526 = vpop.f32.mrb[0].mxu0
    %527 = vmatprep.mubr.f32.mxu0 0.0
    %528 = vmatmul.mubr.f32.gmra.mrb[0].mxu0 %v226
    %v529 = vpop.f32.mrb[0].mxu0
    %v530 = vadd.f32 0.0, %v529
    %v531 = vpop.f32.mrb[0].mxu0
    %532 = vmatprep.mubr.f32.mxu0 0.0
    %533 = vmatmul.mubr.f32.gmra.mrb[0].mxu0 %v227
    %v534 = vpop.f32.mrb[0].mxu0
    %v535 = vadd.f32 0.0, %v534
    %v536 = vpop.f32.mrb[0].mxu0
    %537 = vmatprep.mubr.f32.mxu0 0.0
    %538 = vmatmul.mubr.f32.gmra.mrb[0].mxu0 %v228
    %v539 = vpop.f32.mrb[0].mxu0
    %v540 = vadd.f32 0.0, %v539
    %v541 = vpop.f32.mrb[0].mxu0
    %542 = vmatprep.mubr.f32.mxu0 0.0
    %543 = vmatmul.mubr.f32.gmra.mrb[0].mxu0 %v229
    %v544 = vpop.f32.mrb[0].mxu0
    %v545 = vadd.f32 0.0, %v544
    %v546 = vpop.f32.mrb[0].mxu0
    %547 = vmatprep.mubr.f32.mxu0 0.0
    %548 = vmatmul.mubr.f32.gmra.mrb[0].mxu0 %v230
    %v549 = vpop.f32.mrb[0].mxu0
    %v550 = vadd.f32 0.0, %v549
    %v551 = vpop.f32.mrb[0].mxu0
    %552 = vmatprep.mubr.f32.mxu0 0.0
    %553 = vmatmul.mubr.f32.gmra.mrb[0].mxu0 %v231
    %v554 = vpop.f32.mrb[0].mxu0
    %v555 = vadd.f32 0.0, %v554
    %v556 = vpop.f32.mrb[0].mxu0
    %557 = vmatprep.mubr.f32.mxu0 0.0
    %558 = vmatmul.mubr.f32.gmra.mrb[0].mxu0 %v232
    %v559 = vpop.f32.mrb[0].mxu0
    %v560 = vadd.f32 0.0, %v559
    %v561 = vpop.f32.mrb[0].mxu0
    %562 = vmatprep.mubr.f32.mxu0 0.0
    %563 = vmatmul.mubr.f32.gmra.mrb[0].mxu0 %v233
    %v564 = vpop.f32.mrb[0].mxu0
    %v565 = vadd.f32 0.0, %v564
    %v566 = vpop.f32.mrb[0].mxu0
    %567 = vmatprep.mubr.f32.mxu0 0.0
    %568 = vmatmul.mubr.f32.gmra.mrb[0].mxu0 %v234
    %v569 = vpop.f32.mrb[0].mxu0
    %v570 = vadd.f32 0.0, %v569
    %v571 = vpop.f32.mrb[0].mxu0
    %572 = vmatprep.mubr.f32.mxu0 0.0
    %573 = vmatmul.mubr.f32.gmra.mrb[0].mxu0 %v235
    %v574 = vpop.f32.mrb[0].mxu0
    %v575 = vadd.f32 0.0, %v574
    %v576 = vpop.f32.mrb[0].mxu0
    %577 = vmatprep.mubr.f32.mxu0 0.0
    %578 = vmatmul.mubr.f32.gmra.mrb[0].mxu0 %v236
    %v579 = vpop.f32.mrb[0].mxu0
    %v580 = vadd.f32 0.0, %v579
    %v581 = vpop.f32.mrb[0].mxu0
    %582 = vmatprep.mubr.f32.mxu0 0.0
    %583 = vmatmul.mubr.f32.gmra.mrb[0].mxu0 %v237
    %v584 = vpop.f32.mrb[0].mxu0
    %v585 = vadd.f32 0.0, %v584
    %v586 = vpop.f32.mrb[0].mxu0
    %587 = vmatprep.mubr.f32.mxu0 0.0
    %588 = vmatmul.mubr.f32.gmra.mrb[0].mxu0 %v238
    %v589 = vpop.f32.mrb[0].mxu0
    %v590 = vadd.f32 0.0, %v589
    %v591 = vpop.f32.mrb[0].mxu0
    %592 = vdwg.mxu0
    %v593 = vadd.f32 %v432, %v515
    %v594 = vadd.f32 %v433, %v520
    %v595 = vadd.f32 %v434, %v525
    %v596 = vadd.f32 %v435, %v530
    %v597 = vadd.f32 %v436, %v535
    %v598 = vadd.f32 %v437, %v540
    %v599 = vadd.f32 %v438, %v545
    %v600 = vadd.f32 %v439, %v550
    %v601 = vadd.f32 %v440, %v555
    %v602 = vadd.f32 %v441, %v560
    %v603 = vadd.f32 %v442, %v565
    %v604 = vadd.f32 %v443, %v570
    %v605 = vadd.f32 %v444, %v575
    %v606 = vadd.f32 %v445, %v580
    %v607 = vadd.f32 %v446, %v585
    %v608 = vadd.f32 %v447, %v590
    %609 = vst [vmem:[#allocation3] sm:$0xff] %v593
    %610 = vst [vmem:[#allocation3 + $0x8] sm:$0xff] %v594
    %611 = vst [vmem:[#allocation3 + $0x10] sm:$0xff] %v595
    %612 = vst [vmem:[#allocation3 + $0x18] sm:$0xff] %v596
    %613 = vst [vmem:[#allocation3 + $0x20] sm:$0xff] %v597
    %614 = vst [vmem:[#allocation3 + $0x28] sm:$0xff] %v598
    %615 = vst [vmem:[#allocation3 + $0x30] sm:$0xff] %v599
    %616 = vst [vmem:[#allocation3 + $0x38] sm:$0xff] %v600
    %617 = vst [vmem:[#allocation3 + $0x40] sm:$0xff] %v601
    %618 = vst [vmem:[#allocation3 + $0x48] sm:$0xff] %v602
    %619 = vst [vmem:[#allocation3 + $0x50] sm:$0xff] %v603
    %620 = vst [vmem:[#allocation3 + $0x58] sm:$0xff] %v604
    %621 = vst [vmem:[#allocation3 + $0x60] sm:$0xff] %v605
    %622 = vst [vmem:[#allocation3 + $0x68] sm:$0xff] %v606
    %623 = vst [vmem:[#allocation3 + $0x70] sm:$0xff] %v607
    %624 = vst [vmem:[#allocation3 + $0x78] sm:$0xff] %v608
    // Predicated region
    $region38: #{tpu_custom_call.1} parent=1 // pred_check
      %p625 = pneg %p60
    $region39: #{tpu_custom_call.1} parent=1 // pred_check_branch
      %627 = sbr.rel (%p625) target = $region41
    $region40: #{tpu_custom_call.1} parent=1 // pred_region
      %v628 = vld [vmem:[#allocation2] sm:$0xff]
      %v629 = vld [vmem:[#allocation2 + $0x8] sm:$0xff]
      %v630 = vld [vmem:[#allocation2 + $0x10] sm:$0xff]
      %v631 = vld [vmem:[#allocation2 + $0x18] sm:$0xff]
      %v632 = vld [vmem:[#allocation2 + $0x20] sm:$0xff]
      %v633 = vld [vmem:[#allocation2 + $0x28] sm:$0xff]
      %v634 = vld [vmem:[#allocation2 + $0x30] sm:$0xff]
      %v635 = vld [vmem:[#allocation2 + $0x38] sm:$0xff]
      %v636 = vld [vmem:[#allocation2 + $0x40] sm:$0xff]
      %v637 = vld [vmem:[#allocation2 + $0x48] sm:$0xff]
      %v638 = vld [vmem:[#allocation2 + $0x50] sm:$0xff]
      %v639 = vld [vmem:[#allocation2 + $0x58] sm:$0xff]
      %v640 = vld [vmem:[#allocation2 + $0x60] sm:$0xff]
      %v641 = vld [vmem:[#allocation2 + $0x68] sm:$0xff]
      %v642 = vld [vmem:[#allocation2 + $0x70] sm:$0xff]
      %v643 = vld [vmem:[#allocation2 + $0x78] sm:$0xff]
      %v644 = vld [vmem:[#allocation3] sm:$0xff]
      %v645 = vld [vmem:[#allocation3 + $0x8] sm:$0xff]
      %v646 = vld [vmem:[#allocation3 + $0x10] sm:$0xff]
      %v647 = vld [vmem:[#allocation3 + $0x18] sm:$0xff]
      %v648 = vld [vmem:[#allocation3 + $0x20] sm:$0xff]
      %v649 = vld [vmem:[#allocation3 + $0x28] sm:$0xff]
      %v650 = vld [vmem:[#allocation3 + $0x30] sm:$0xff]
      %v651 = vld [vmem:[#allocation3 + $0x38] sm:$0xff]
      %v652 = vld [vmem:[#allocation3 + $0x40] sm:$0xff]
      %v653 = vld [vmem:[#allocation3 + $0x48] sm:$0xff]
      %v654 = vld [vmem:[#allocation3 + $0x50] sm:$0xff]
      %v655 = vld [vmem:[#allocation3 + $0x58] sm:$0xff]
      %v656 = vld [vmem:[#allocation3 + $0x60] sm:$0xff]
      %v657 = vld [vmem:[#allocation3 + $0x68] sm:$0xff]
      %v658 = vld [vmem:[#allocation3 + $0x70] sm:$0xff]
      %v659 = vld [vmem:[#allocation3 + $0x78] sm:$0xff]
      %v660 = vmax.f32 %v628, 1.0
      %v661 = vmax.f32 %v629, 1.0
      %v662 = vmax.f32 %v630, 1.0
      %v663 = vmax.f32 %v631, 1.0
      %v664 = vmax.f32 %v632, 1.0
      %v665 = vmax.f32 %v633, 1.0
      %v666 = vmax.f32 %v634, 1.0
      %v667 = vmax.f32 %v635, 1.0
      %v668 = vmax.f32 %v636, 1.0
      %v669 = vmax.f32 %v637, 1.0
      %v670 = vmax.f32 %v638, 1.0
      %v671 = vmax.f32 %v639, 1.0
      %v672 = vmax.f32 %v640, 1.0
      %v673 = vmax.f32 %v641, 1.0
      %v674 = vmax.f32 %v642, 1.0
      %v675 = vmax.f32 %v643, 1.0
      %v676 = vmax.f32 %v644, 1.0
      %v677 = vmax.f32 %v645, 1.0
      %v678 = vmax.f32 %v646, 1.0
      %v679 = vmax.f32 %v647, 1.0
      %v680 = vmax.f32 %v648, 1.0
      %v681 = vmax.f32 %v649, 1.0
      %v682 = vmax.f32 %v650, 1.0
      %v683 = vmax.f32 %v651, 1.0
      %v684 = vmax.f32 %v652, 1.0
      %v685 = vmax.f32 %v653, 1.0
      %v686 = vmax.f32 %v654, 1.0
      %v687 = vmax.f32 %v655, 1.0
      %v688 = vmax.f32 %v656, 1.0
      %v689 = vmax.f32 %v657, 1.0
      %v690 = vmax.f32 %v658, 1.0
      %v691 = vmax.f32 %v659, 1.0
      %693 = vset.pattern.permute.xlu0 127
      %694 = vperm.xlu0 %693, %v660
      %v695 = vpop.permute.xlu0 %694
      %698 = vset.pattern.permute.xlu0 127
      %699 = vperm.xlu0 %698, %v661
      %v700 = vpop.permute.xlu0 %699
      %703 = vset.pattern.permute.xlu0 127
      %704 = vperm.xlu0 %703, %v662
      %v705 = vpop.permute.xlu0 %704
      %708 = vset.pattern.permute.xlu0 127
      %709 = vperm.xlu0 %708, %v663
      %v710 = vpop.permute.xlu0 %709
      %713 = vset.pattern.permute.xlu0 127
      %714 = vperm.xlu0 %713, %v664
      %v715 = vpop.permute.xlu0 %714
      %718 = vset.pattern.permute.xlu0 127
      %719 = vperm.xlu0 %718, %v665
      %v720 = vpop.permute.xlu0 %719
      %723 = vset.pattern.permute.xlu0 127
      %724 = vperm.xlu0 %723, %v666
      %v725 = vpop.permute.xlu0 %724
      %728 = vset.pattern.permute.xlu0 127
      %729 = vperm.xlu0 %728, %v667
      %v730 = vpop.permute.xlu0 %729
      %733 = vset.pattern.permute.xlu0 127
      %734 = vperm.xlu0 %733, %v668
      %v735 = vpop.permute.xlu0 %734
      %738 = vset.pattern.permute.xlu0 127
      %739 = vperm.xlu0 %738, %v669
      %v740 = vpop.permute.xlu0 %739
      %743 = vset.pattern.permute.xlu0 127
      %744 = vperm.xlu0 %743, %v670
      %v745 = vpop.permute.xlu0 %744
      %748 = vset.pattern.permute.xlu0 127
      %749 = vperm.xlu0 %748, %v671
      %v750 = vpop.permute.xlu0 %749
      %753 = vset.pattern.permute.xlu0 127
      %754 = vperm.xlu0 %753, %v672
      %v755 = vpop.permute.xlu0 %754
      %758 = vset.pattern.permute.xlu0 127
      %759 = vperm.xlu0 %758, %v673
      %v760 = vpop.permute.xlu0 %759
      %763 = vset.pattern.permute.xlu0 127
      %764 = vperm.xlu0 %763, %v674
      %v765 = vpop.permute.xlu0 %764
      %768 = vset.pattern.permute.xlu0 127
      %769 = vperm.xlu0 %768, %v675
      %v770 = vpop.permute.xlu0 %769
      %v772 = vrcp.pop %v695
      %v773 = vmul.f32 %v628, %v772
      %v774 = vrcp.pop %v700
      %v775 = vmul.f32 %v629, %v774
      %v776 = vrcp.pop %v705
      %v777 = vmul.f32 %v630, %v776
      %v778 = vrcp.pop %v710
      %v779 = vmul.f32 %v631, %v778
      %v780 = vrcp.pop %v715
      %v781 = vmul.f32 %v632, %v780
      %v782 = vrcp.pop %v720
      %v783 = vmul.f32 %v633, %v782
      %v784 = vrcp.pop %v725
      %v785 = vmul.f32 %v634, %v784
      %v786 = vrcp.pop %v730
      %v787 = vmul.f32 %v635, %v786
      %v788 = vrcp.pop %v735
      %v789 = vmul.f32 %v636, %v788
      %v790 = vrcp.pop %v740
      %v791 = vmul.f32 %v637, %v790
      %v792 = vrcp.pop %v745
      %v793 = vmul.f32 %v638, %v792
      %v794 = vrcp.pop %v750
      %v795 = vmul.f32 %v639, %v794
      %v796 = vrcp.pop %v755
      %v797 = vmul.f32 %v640, %v796
      %v798 = vrcp.pop %v760
      %v799 = vmul.f32 %v641, %v798
      %v800 = vrcp.pop %v765
      %v801 = vmul.f32 %v642, %v800
      %v802 = vrcp.pop %v770
      %v803 = vmul.f32 %v643, %v802
      %805 = vset.pattern.permute.xlu0 127
      %806 = vperm.xlu0 %805, %v676
      %v807 = vpop.permute.xlu0 %806
      %810 = vset.pattern.permute.xlu0 127
      %811 = vperm.xlu0 %810, %v677
      %v812 = vpop.permute.xlu0 %811
      %815 = vset.pattern.permute.xlu0 127
      %816 = vperm.xlu0 %815, %v678
      %v817 = vpop.permute.xlu0 %816
      %820 = vset.pattern.permute.xlu0 127
      %821 = vperm.xlu0 %820, %v679
      %v822 = vpop.permute.xlu0 %821
      %825 = vset.pattern.permute.xlu0 127
      %826 = vperm.xlu0 %825, %v680
      %v827 = vpop.permute.xlu0 %826
      %830 = vset.pattern.permute.xlu0 127
      %831 = vperm.xlu0 %830, %v681
      %v832 = vpop.permute.xlu0 %831
      %835 = vset.pattern.permute.xlu0 127
      %836 = vperm.xlu0 %835, %v682
      %v837 = vpop.permute.xlu0 %836
      %840 = vset.pattern.permute.xlu0 127
      %841 = vperm.xlu0 %840, %v683
      %v842 = vpop.permute.xlu0 %841
      %845 = vset.pattern.permute.xlu0 127
      %846 = vperm.xlu0 %845, %v684
      %v847 = vpop.permute.xlu0 %846
      %850 = vset.pattern.permute.xlu0 127
      %851 = vperm.xlu0 %850, %v685
      %v852 = vpop.permute.xlu0 %851
      %855 = vset.pattern.permute.xlu0 127
      %856 = vperm.xlu0 %855, %v686
      %v857 = vpop.permute.xlu0 %856
      %860 = vset.pattern.permute.xlu0 127
      %861 = vperm.xlu0 %860, %v687
      %v862 = vpop.permute.xlu0 %861
      %865 = vset.pattern.permute.xlu0 127
      %866 = vperm.xlu0 %865, %v688
      %v867 = vpop.permute.xlu0 %866
      %870 = vset.pattern.permute.xlu0 127
      %871 = vperm.xlu0 %870, %v689
      %v872 = vpop.permute.xlu0 %871
      %875 = vset.pattern.permute.xlu0 127
      %876 = vperm.xlu0 %875, %v690
      %v877 = vpop.permute.xlu0 %876
      %880 = vset.pattern.permute.xlu0 127
      %881 = vperm.xlu0 %880, %v691
      %v882 = vpop.permute.xlu0 %881
      %v884 = vrcp.pop %v807
      %v885 = vmul.f32 %v644, %v884
      %v886 = vrcp.pop %v812
      %v887 = vmul.f32 %v645, %v886
      %v888 = vrcp.pop %v817
      %v889 = vmul.f32 %v646, %v888
      %v890 = vrcp.pop %v822
      %v891 = vmul.f32 %v647, %v890
      %v892 = vrcp.pop %v827
      %v893 = vmul.f32 %v648, %v892
      %v894 = vrcp.pop %v832
      %v895 = vmul.f32 %v649, %v894
      %v896 = vrcp.pop %v837
      %v897 = vmul.f32 %v650, %v896
      %v898 = vrcp.pop %v842
      %v899 = vmul.f32 %v651, %v898
      %v900 = vrcp.pop %v847
      %v901 = vmul.f32 %v652, %v900
      %v902 = vrcp.pop %v852
      %v903 = vmul.f32 %v653, %v902
      %v904 = vrcp.pop %v857
      %v905 = vmul.f32 %v654, %v904
      %v906 = vrcp.pop %v862
      %v907 = vmul.f32 %v655, %v906
      %v908 = vrcp.pop %v867
      %v909 = vmul.f32 %v656, %v908
      %v910 = vrcp.pop %v872
      %v911 = vmul.f32 %v657, %v910
      %v912 = vrcp.pop %v877
      %v913 = vmul.f32 %v658, %v912
      %v914 = vrcp.pop %v882
      %v915 = vmul.f32 %v659, %v914
      %v916 = vld [vmem:[#allocation9] sm:$0xff]
      %v917 = vld [vmem:[#allocation9 + $0x8] sm:$0xff]
      %v918 = vld [vmem:[#allocation9 + $0x10] sm:$0xff]
      %v919 = vld [vmem:[#allocation9 + $0x18] sm:$0xff]
      %v920 = vld [vmem:[#allocation9 + $0x20] sm:$0xff]
      %v921 = vld [vmem:[#allocation9 + $0x28] sm:$0xff]
      %v922 = vld [vmem:[#allocation9 + $0x30] sm:$0xff]
      %v923 = vld [vmem:[#allocation9 + $0x38] sm:$0xff]
      %v924 = vld [vmem:[#allocation9 + $0x40] sm:$0xff]
      %v925 = vld [vmem:[#allocation9 + $0x48] sm:$0xff]
      %v926 = vld [vmem:[#allocation9 + $0x50] sm:$0xff]
      %v927 = vld [vmem:[#allocation9 + $0x58] sm:$0xff]
      %v928 = vld [vmem:[#allocation9 + $0x60] sm:$0xff]
      %v929 = vld [vmem:[#allocation9 + $0x68] sm:$0xff]
      %v930 = vld [vmem:[#allocation9 + $0x70] sm:$0xff]
      %v931 = vld [vmem:[#allocation9 + $0x78] sm:$0xff]
      %v932 = vld [vmem:[#allocation9 + $0x80] sm:$0xff]
      %v933 = vld [vmem:[#allocation9 + $0x88] sm:$0xff]
      %v934 = vld [vmem:[#allocation9 + $0x90] sm:$0xff]
      %v935 = vld [vmem:[#allocation9 + $0x98] sm:$0xff]
      %v936 = vld [vmem:[#allocation9 + $0xa0] sm:$0xff]
      %v937 = vld [vmem:[#allocation9 + $0xa8] sm:$0xff]
      %v938 = vld [vmem:[#allocation9 + $0xb0] sm:$0xff]
      %v939 = vld [vmem:[#allocation9 + $0xb8] sm:$0xff]
      %v940 = vld [vmem:[#allocation9 + $0xc0] sm:$0xff]
      %v941 = vld [vmem:[#allocation9 + $0xc8] sm:$0xff]
      %v942 = vld [vmem:[#allocation9 + $0xd0] sm:$0xff]
      %v943 = vld [vmem:[#allocation9 + $0xd8] sm:$0xff]
      %v944 = vld [vmem:[#allocation9 + $0xe0] sm:$0xff]
      %v945 = vld [vmem:[#allocation9 + $0xe8] sm:$0xff]
      %v946 = vld [vmem:[#allocation9 + $0xf0] sm:$0xff]
      %v947 = vld [vmem:[#allocation9 + $0xf8] sm:$0xff]
      %v948 = vld [vmem:[%s4] sm:$0x1]
      %v950 = vlaneseq
      %v951 = vshrl.u32 %v950, 7
      %v952 = vsub.s32 0, %v951
      %v953 = vrot.slane %v948, %v952
      %955 = vmatprep.subr.mxu0 0.0
      %956 = vmatpush1.msra.mxu0 %v916
      %957 = vmatprep.subr.mxu0 0.0
      %958 = vmatpush1.msra.mxu0 %v917
      %959 = vmatprep.subr.mxu0 0.0
      %960 = vmatpush1.msra.mxu0 %v918
      %961 = vmatprep.subr.mxu0 0.0
      %962 = vmatpush1.msra.mxu0 %v919
      %963 = vmatprep.subr.mxu0 0.0
      %964 = vmatpush1.msra.mxu0 %v920
      %965 = vmatprep.subr.mxu0 0.0
      %966 = vmatpush1.msra.mxu0 %v921
      %967 = vmatprep.subr.mxu0 0.0
      %968 = vmatpush1.msra.mxu0 %v922
      %969 = vmatprep.subr.mxu0 0.0
      %970 = vmatpush1.msra.mxu0 %v923
      %971 = vmatprep.subr.mxu0 0.0
      %972 = vmatpush1.msra.mxu0 %v924
      %973 = vmatprep.subr.mxu0 0.0
      %974 = vmatpush1.msra.mxu0 %v925
      %975 = vmatprep.subr.mxu0 0.0
      %976 = vmatpush1.msra.mxu0 %v926
      %977 = vmatprep.subr.mxu0 0.0
      %978 = vmatpush1.msra.mxu0 %v927
      %979 = vmatprep.subr.mxu0 0.0
      %980 = vmatpush1.msra.mxu0 %v928
      %981 = vmatprep.subr.mxu0 0.0
      %982 = vmatpush1.msra.mxu0 %v929
      %983 = vmatprep.subr.mxu0 0.0
      %984 = vmatpush1.msra.mxu0 %v930
      %985 = vmatprep.subr.mxu0 0.0
      %986 = vmatpush1.msra.mxu0 %v931
      %987 = vmatprep.subr.mxu0 0.0
      %988 = vmatpush1.msra.mxu0 %v932
      %989 = vmatprep.subr.mxu0 0.0
      %990 = vmatpush1.msra.mxu0 %v933
      %991 = vmatprep.subr.mxu0 0.0
      %992 = vmatpush1.msra.mxu0 %v934
      %993 = vmatprep.subr.mxu0 0.0
      %994 = vmatpush1.msra.mxu0 %v935
      %995 = vmatprep.subr.mxu0 0.0
      %996 = vmatpush1.msra.mxu0 %v936
      %997 = vmatprep.subr.mxu0 0.0
      %998 = vmatpush1.msra.mxu0 %v937
      %999 = vmatprep.subr.mxu0 0.0
      %1000 = vmatpush1.msra.mxu0 %v938
      %1001 = vmatprep.subr.mxu0 0.0
      %1002 = vmatpush1.msra.mxu0 %v939
      %1003 = vmatprep.subr.mxu0 0.0
      %1004 = vmatpush1.msra.mxu0 %v940
      %1005 = vmatprep.subr.mxu0 0.0
      %1006 = vmatpush1.msra.mxu0 %v941
      %1007 = vmatprep.subr.mxu0 0.0
      %1008 = vmatpush1.msra.mxu0 %v942
      %1009 = vmatprep.subr.mxu0 0.0
      %1010 = vmatpush1.msra.mxu0 %v943
      %1011 = vmatprep.subr.mxu0 0.0
      %1012 = vmatpush1.msra.mxu0 %v944
      %1013 = vmatprep.subr.mxu0 0.0
      %1014 = vmatpush1.msra.mxu0 %v945
      %1015 = vmatprep.subr.mxu0 0.0
      %1016 = vmatpush1.msra.mxu0 %v946
      %1017 = vmatprep.subr.mxu0 0.0
      %1018 = vmatpush1.msra.mxu0 %v947
      %1019 = vmatprep.mubr.f32.mxu0 %v885
      %1020 = vmatmul.mubr.f32.gmra.mrb[0].mxu0 %v773
      %v1021 = vpop.f32.mrb[0].mxu0
      %v1022 = vadd.f32 %v953, %v1021
      %v1023 = vpop.f32.mrb[0].mxu0
      %1024 = vmatprep.mubr.f32.mxu0 %v887
      %1025 = vmatmul.mubr.f32.gmra.mrb[0].mxu0 %v775
      %v1026 = vpop.f32.mrb[0].mxu0
      %v1027 = vadd.f32 %v953, %v1026
      %v1028 = vpop.f32.mrb[0].mxu0
      %1029 = vmatprep.mubr.f32.mxu0 %v889
      %1030 = vmatmul.mubr.f32.gmra.mrb[0].mxu0 %v777
      %v1031 = vpop.f32.mrb[0].mxu0
      %v1032 = vadd.f32 %v953, %v1031
      %v1033 = vpop.f32.mrb[0].mxu0
      %1034 = vmatprep.mubr.f32.mxu0 %v891
      %1035 = vmatmul.mubr.f32.gmra.mrb[0].mxu0 %v779
      %v1036 = vpop.f32.mrb[0].mxu0
      %v1037 = vadd.f32 %v953, %v1036
      %v1038 = vpop.f32.mrb[0].mxu0
      %1039 = vmatprep.mubr.f32.mxu0 %v893
      %1040 = vmatmul.mubr.f32.gmra.mrb[0].mxu0 %v781
      %v1041 = vpop.f32.mrb[0].mxu0
      %v1042 = vadd.f32 %v953, %v1041
      %v1043 = vpop.f32.mrb[0].mxu0
      %1044 = vmatprep.mubr.f32.mxu0 %v895
      %1045 = vmatmul.mubr.f32.gmra.mrb[0].mxu0 %v783
      %v1046 = vpop.f32.mrb[0].mxu0
      %v1047 = vadd.f32 %v953, %v1046
      %v1048 = vpop.f32.mrb[0].mxu0
      %1049 = vmatprep.mubr.f32.mxu0 %v897
      %1050 = vmatmul.mubr.f32.gmra.mrb[0].mxu0 %v785
      %v1051 = vpop.f32.mrb[0].mxu0
      %v1052 = vadd.f32 %v953, %v1051
      %v1053 = vpop.f32.mrb[0].mxu0
      %1054 = vmatprep.mubr.f32.mxu0 %v899
      %1055 = vmatmul.mubr.f32.gmra.mrb[0].mxu0 %v787
      %v1056 = vpop.f32.mrb[0].mxu0
      %v1057 = vadd.f32 %v953, %v1056
      %v1058 = vpop.f32.mrb[0].mxu0
      %1059 = vmatprep.mubr.f32.mxu0 %v901
      %1060 = vmatmul.mubr.f32.gmra.mrb[0].mxu0 %v789
      %v1061 = vpop.f32.mrb[0].mxu0
      %v1062 = vadd.f32 %v953, %v1061
      %v1063 = vpop.f32.mrb[0].mxu0
      %1064 = vmatprep.mubr.f32.mxu0 %v903
      %1065 = vmatmul.mubr.f32.gmra.mrb[0].mxu0 %v791
      %v1066 = vpop.f32.mrb[0].mxu0
      %v1067 = vadd.f32 %v953, %v1066
      %v1068 = vpop.f32.mrb[0].mxu0
      %1069 = vmatprep.mubr.f32.mxu0 %v905
      %1070 = vmatmul.mubr.f32.gmra.mrb[0].mxu0 %v793
      %v1071 = vpop.f32.mrb[0].mxu0
      %v1072 = vadd.f32 %v953, %v1071
      %v1073 = vpop.f32.mrb[0].mxu0
      %1074 = vmatprep.mubr.f32.mxu0 %v907
      %1075 = vmatmul.mubr.f32.gmra.mrb[0].mxu0 %v795
      %v1076 = vpop.f32.mrb[0].mxu0
      %v1077 = vadd.f32 %v953, %v1076
      %v1078 = vpop.f32.mrb[0].mxu0
      %1079 = vmatprep.mubr.f32.mxu0 %v909
      %1080 = vmatmul.mubr.f32.gmra.mrb[0].mxu0 %v797
      %v1081 = vpop.f32.mrb[0].mxu0
      %v1082 = vadd.f32 %v953, %v1081
      %v1083 = vpop.f32.mrb[0].mxu0
      %1084 = vmatprep.mubr.f32.mxu0 %v911
      %1085 = vmatmul.mubr.f32.gmra.mrb[0].mxu0 %v799
      %v1086 = vpop.f32.mrb[0].mxu0
      %v1087 = vadd.f32 %v953, %v1086
      %v1088 = vpop.f32.mrb[0].mxu0
      %1089 = vmatprep.mubr.f32.mxu0 %v913
      %1090 = vmatmul.mubr.f32.gmra.mrb[0].mxu0 %v801
      %v1091 = vpop.f32.mrb[0].mxu0
      %v1092 = vadd.f32 %v953, %v1091
      %v1093 = vpop.f32.mrb[0].mxu0
      %1094 = vmatprep.mubr.f32.mxu0 %v915
      %1095 = vmatmul.mubr.f32.gmra.mrb[0].mxu0 %v803
      %v1096 = vpop.f32.mrb[0].mxu0
      %v1097 = vadd.f32 %v953, %v1096
      %v1098 = vpop.f32.mrb[0].mxu0
      %1099 = vdwg.mxu0
      %v1100 = vmax.f32 %v1022, 0.0
      %v1101 = vmax.f32 %v1027, 0.0
      %v1102 = vmax.f32 %v1032, 0.0
      %v1103 = vmax.f32 %v1037, 0.0
      %v1104 = vmax.f32 %v1042, 0.0
      %v1105 = vmax.f32 %v1047, 0.0
      %v1106 = vmax.f32 %v1052, 0.0
      %v1107 = vmax.f32 %v1057, 0.0
      %v1108 = vmax.f32 %v1062, 0.0
      %v1109 = vmax.f32 %v1067, 0.0
      %v1110 = vmax.f32 %v1072, 0.0
      %v1111 = vmax.f32 %v1077, 0.0
      %v1112 = vmax.f32 %v1082, 0.0
      %v1113 = vmax.f32 %v1087, 0.0
      %v1114 = vmax.f32 %v1092, 0.0
      %v1115 = vmax.f32 %v1097, 0.0
      %1116 = vst [vmem:[#allocation10] sm:$0xff] %v1100
      %1117 = vst [vmem:[#allocation10 + $0x8] sm:$0xff] %v1101
      %1118 = vst [vmem:[#allocation10 + $0x10] sm:$0xff] %v1102
      %1119 = vst [vmem:[#allocation10 + $0x18] sm:$0xff] %v1103
      %1120 = vst [vmem:[#allocation10 + $0x20] sm:$0xff] %v1104
      %1121 = vst [vmem:[#allocation10 + $0x28] sm:$0xff] %v1105
      %1122 = vst [vmem:[#allocation10 + $0x30] sm:$0xff] %v1106
      %1123 = vst [vmem:[#allocation10 + $0x38] sm:$0xff] %v1107
      %1124 = vst [vmem:[#allocation10 + $0x40] sm:$0xff] %v1108
      %1125 = vst [vmem:[#allocation10 + $0x48] sm:$0xff] %v1109
      %1126 = vst [vmem:[#allocation10 + $0x50] sm:$0xff] %v1110
      %1127 = vst [vmem:[#allocation10 + $0x58] sm:$0xff] %v1111
      %1128 = vst [vmem:[#allocation10 + $0x60] sm:$0xff] %v1112
      %1129 = vst [vmem:[#allocation10 + $0x68] sm:$0xff] %v1113
      %1130 = vst [vmem:[#allocation10 + $0x70] sm:$0xff] %v1114
      %1131 = vst [vmem:[#allocation10 + $0x78] sm:$0xff] %v1115
    $region41: #{tpu_custom_call.1} parent=1 // pred_fallthru
      _
    // Predicated region
    $region42: #{tpu_custom_call.1} parent=1 // pred_check
      _
    $region43: #{tpu_custom_call.1} parent=1 // pred_check_branch
      %1133 = sbr.rel (0) target = $region45
    $region44: #{tpu_custom_call.1} parent=1 // pred_region
      %s1135 = ssub.s32 2048, 2048
      %1136 = vsyncadd [#allocation6], %s1135
      %s1137 = sshll.u32 [#allocation10], 4
      %s1138 = int_to_ptr.vmem [resolvable:$true] %s1137
      %1143 = dma.vmem_to_hbm [thread:$0]  %s1138, 2048, %s5, [#allocation6], 128, 128, 8
    $region45: #{tpu_custom_call.1} parent=1 // pred_fallthru
      _
    // Predicated region
    $region46: #{tpu_custom_call.1} parent=1 // pred_check
      _
    $region47: #{tpu_custom_call.1} parent=1 // pred_check_branch
      %1145 = sbr.rel (0) target = $region49
    $region48: #{tpu_custom_call.1} parent=1 // pred_region
      %1146 = dma.done [#allocation6], 2048
    $region49: #{tpu_custom_call.1} parent=1 // pred_fallthru
      _
    %1147 = vsyncpa [#allocation5], 1
    %1148 = vsyncpa [#allocation8], 1
    %1149 = vsyncpa [#allocation6], 1

</llo_original>
